<compile_context>
chip_gen: v7x
topology: tpu7x:2x2x1
jax: 0.10.0
libtpu: 0.0.40
codegen_flags: <defaults>
</compile_context>

<pallas_src>
from typing import NamedTuple

import jax
import jax.numpy as jnp
from jax.experimental import pallas as pl
from jax.experimental.pallas import tpu as pltpu


def _round_up(x: int, m: int) -> int:
    return ((x + m - 1) // m) * m


def _cdiv(a: int, b: int) -> int:
    return (a + b - 1) // b


def _vmem_limit_bytes() -> int:
    """Generation-aware VMEM limit (v5e/v6e: 128 MiB physical, v7x: 64 MiB)."""
    cap = 64 * 1024 * 1024  # conservative fallback (v7x per-TC VMEM)
    try:
        cap = int(pltpu.get_tpu_info().vmem_capacity_bytes)
    except Exception:
        pass
    # ~16 MiB headroom for compiler scratch; clamp to [32 MiB, 112 MiB].
    return max(32 * 1024 * 1024, min(cap - 16 * 1024 * 1024, 112 * 1024 * 1024))


# --------------------------------------------------------------------------
# Kernels
# --------------------------------------------------------------------------

def _linear_block_fullk_kernel(x_ref, wt_ref, b_ref, o_ref):
    # Full-K fold: one MXU pass per output tile, no accumulator RMW.
    # x_ref: (tm, Kp), wt_ref: (Kp, tn), b_ref: (1, tn), o_ref: (tm, tn)
    acc = jnp.dot(x_ref[...], wt_ref[...], preferred_element_type=jnp.float32)
    y = acc + b_ref[...].astype(jnp.float32)
    o_ref[...] = jnp.maximum(y, 0.0).astype(o_ref.dtype)


def _linear_block_kloop_kernel(x_ref, wt_ref, b_ref, o_ref, acc_ref):
    # Fallback for very large K: f32 VMEM accumulator across the K grid axis.
    # CORRECTNESS NOTE: this relies on k being the LAST (innermost) grid axis
    # and on the output index_map being k-independent (output tile stays
    # resident across k).  Do not reorder the grid.
    k = pl.program_id(2)

    @pl.when(k == 0)
    def _():
        acc_ref[...] = jnp.zeros_like(acc_ref)

    acc_ref[...] += jnp.dot(
        x_ref[...], wt_ref[...], preferred_element_type=jnp.float32)

    @pl.when(k == pl.num_programs(2) - 1)
    def _():
        y = acc_ref[...] + b_ref[...].astype(jnp.float32)
        o_ref[...] = jnp.maximum(y, 0.0).astype(o_ref.dtype)


# --------------------------------------------------------------------------
# Parameter prep (do this ONCE; keep the returned params persistent)
# --------------------------------------------------------------------------

class LinearBlockParams(NamedTuple):
    wt: jax.Array          # (Kp, Np) = transposed, lane-padded, compute dtype
    b2: jax.Array          # (1, Np)  f32, lane-padded
    in_features: int
    out_features: int


def prepare_params(weight, bias, compute_dtype=jnp.bfloat16) -> LinearBlockParams:
    """One-time parameter prep.

    weight: (out_features, in_features)  -- PyTorch nn.Linear layout.
    Transpose + pad to lane multiples of 128 once, persistently.  Default
    compute dtype is bf16 (MXU-native); use jnp.float32 for exact parity.
    """
    out_f, in_f = weight.shape
    Kp, Np = _round_up(in_f, 128), _round_up(out_f, 128)
    wt = jnp.asarray(weight, jnp.float32).T                       # (K, N)
    wt = jnp.pad(wt, ((0, Kp - in_f), (0, Np - out_f))).astype(compute_dtype)
    b2 = jnp.pad(jnp.asarray(bias, jnp.float32), (0, Np - out_f)).reshape(1, Np)
    return LinearBlockParams(wt, b2, in_f, out_f)


# --------------------------------------------------------------------------
# Forward
# --------------------------------------------------------------------------

def linear_block_apply(x, params: LinearBlockParams, *,
                       tile_m=512, tile_n=512, tile_k=512,
                       out_dtype=None, fold_k=None):
    """y = relu(x @ W^T + b) with pre-transposed/padded params."""
    wt, b2, in_f, out_f = params
    Kp, Np = wt.shape
    compute_dtype = wt.dtype
    itemsize = jnp.dtype(compute_dtype).itemsize
    out_dtype = x.dtype if out_dtype is None else out_dtype
    out_itemsize = jnp.dtype(out_dtype).itemsize

    lead_shape = x.shape[:-1]
    K = x.shape[-1]
    assert K == in_f, f"expected last dim {in_f}, got {K}"
    x2 = x.reshape(-1, K)
    M = x2.shape[0]

    # Cast once to compute dtype; zero-pad K (mandatory: garbage in the
    # reduction dim would corrupt valid outputs) and M up to a sublane
    # multiple (<= 7 rows, fuses with the cast copy).  N/M boundary blocks
    # beyond that are partial; garbage rows/cols never mix into valid ones
    # and are sliced off at the end.
    Mp = _round_up(max(M, 1), 8)
    xp = x2.astype(compute_dtype)
    if (Mp, Kp) != (M, K):
        xp = jnp.pad(xp, ((0, Mp - M), (0, Kp - K)))

    # ---- tile selection -------------------------------------------------
    m_align = 16 if itemsize == 2 else 8     # bf16 packs 2 rows per sublane
    tm = min(_round_up(tile_m, m_align), Mp)
    tn = min(_round_up(tile_n, 128), Np)

    # v7x has 2 TensorCores sharing "parallel" grid axes: keep >= 2 parallel
    # output blocks for small-M calls when N allows it.
    if _cdiv(Mp, tm) == 1 and tn >= Np and Np >= 256:
        tn = _round_up(Np // 2, 128)

    vmem_limit = _vmem_limit_bytes()
    budget = int(vmem_limit * 0.75)

    def fullk_bytes(tm_, tn_):
        return (2 * (tm_ * Kp + Kp * tn_) * itemsize   # double-buffered strips
                + 2 * tm_ * tn_ * out_itemsize         # double-buffered out
                + 4 * tn_ * 4)                         # bias (tiny)

    if fold_k is None:
        fold_k = fullk_bytes(tm, tn) <= budget
    if fold_k:
        while fullk_bytes(tm, tn) > budget and tn > 256:
            tn = _round_up(tn // 2, 128)
        while fullk_bytes(tm, tn) > budget and tm > 2 * m_align:
            tm = _round_up(tm // 2, m_align)
        if fullk_bytes(tm, tn) > budget:
            fold_k = False

    if not fold_k:
        # Pick tk as a 128-multiple DIVISOR of Kp so no K block reads garbage.
        q = Kp // 128
        d_max = max(1, min(_round_up(tile_k, 128) // 128, q))
        d = 1
        for cand in range(d_max, 0, -1):
            if q % cand == 0:
                d = cand
                break
        tk = 128 * d

        def kloop_bytes(tm_, tn_, tk_):
            return (2 * (tm_ * tk_ + tk_ * tn_) * itemsize
                    + tm_ * tn_ * 4                    # f32 accumulator
                    + 2 * tm_ * tn_ * out_itemsize
                    + 4 * tn_ * 4)

        while kloop_bytes(tm, tn, tk) > budget and tn > 256:
            tn = _round_up(tn // 2, 128)
        while kloop_bytes(tm, tn, tk) > budget and tm > 2 * m_align:
            tm = _round_up(tm // 2, m_align)

    grid_m, grid_n = _cdiv(Mp, tm), _cdiv(Np, tn)

    # Advisory cost estimate: count operand re-reads across the grid.
    bytes_accessed = (Mp * Kp * itemsize * grid_n      # x re-read per N block
                      + Kp * Np * itemsize * grid_m    # W re-read per M block
                      + Np * 4 * grid_m                # bias
                      + Mp * Np * out_itemsize)        # output
    cost = pl.CostEstimate(flops=2 * Mp * Np * Kp, transcendentals=0,
                           bytes_accessed=int(bytes_accessed))

    if fold_k:
        grid = (grid_m, grid_n)
        in_specs = [
            pl.BlockSpec((tm, Kp), lambda i, j: (i, 0)),   # x strip
            pl.BlockSpec((Kp, tn), lambda i, j: (0, j)),   # W^T strip
            pl.BlockSpec((1, tn), lambda i, j: (0, j)),    # bias tile
        ]
        out_specs = pl.BlockSpec((tm, tn), lambda i, j: (i, j))
        scratch = []
        kernel = _linear_block_fullk_kernel
        dim_sem = ("parallel", "parallel")
    else:
        grid_k = Kp // tk
        grid = (grid_m, grid_n, grid_k)                    # k MUST be last
        in_specs = [
            pl.BlockSpec((tm, tk), lambda i, j, k: (i, k)),
            pl.BlockSpec((tk, tn), lambda i, j, k: (k, j)),
            pl.BlockSpec((1, tn), lambda i, j, k: (0, j)),
        ]
        out_specs = pl.BlockSpec((tm, tn), lambda i, j, k: (i, j))
        scratch = [pltpu.VMEM((tm, tn), jnp.float32)]
        kernel = _linear_block_kloop_kernel
        dim_sem = ("parallel", "parallel", "arbitrary")

    out = pl.pallas_call(
        kernel,
        out_shape=jax.ShapeDtypeStruct((Mp, Np), out_dtype),
        grid_spec=pltpu.PrefetchScalarGridSpec(
            num_scalar_prefetch=0,
            grid=grid,
            in_specs=in_specs,
            out_specs=out_specs,
            scratch_shapes=scratch,
        ),
        compiler_params=pltpu.CompilerParams(
            dimension_semantics=dim_sem,
            vmem_limit_bytes=vmem_limit,
        ),
        cost_estimate=cost,
    )(xp, wt, b2)

    out = out[:M, :out_f]
    return out.reshape(*lead_shape, out_f)


def linear_block(x, weight, bias, *, compute_dtype=jnp.bfloat16, **kwargs):
    """Convenience wrapper (re-preps params every call; for testing only —
    in production call prepare_params() once and reuse the result)."""
    params = prepare_params(weight, bias, compute_dtype)
    return linear_block_apply(x, params, **kwargs)


def reference(x, weight, bias):
    y = jnp.einsum("...k,nk->...n", x, weight,
                   precision=jax.lax.Precision.HIGHEST) + bias
    return jnp.maximum(y, 0.0)


# --------------------------------------------------------------------------
# Tests
# --------------------------------------------------------------------------

if __name__ == "__main__":
    # LinearBlock(in_features=32, out_features=64), batch of 8 rows.
    batch, in_features, out_features = 8, 32, 64

    key = jax.random.PRNGKey(0)
    kx, kw, kb = jax.random.split(key, 3)

    x = jax.random.normal(kx, (batch, in_features), dtype=jnp.float32)
    bound = 1.0 / (in_features ** 0.5)
    weight = jax.random.uniform(kw, (out_features, in_features),
                                minval=-bound, maxval=bound, dtype=jnp.float32)
    bias = jax.random.uniform(kb, (out_features,),
                              minval=-bound, maxval=bound, dtype=jnp.float32)
    y_ref = reference(x, weight, bias)

    # ---- f32 parity path (full-K fold, 2-D grid) ----
    p_f32 = prepare_params(weight, bias, jnp.float32)
    y32 = linear_block_apply(x, p_f32)
    jax.block_until_ready(y32)
    assert y32.shape == (batch, out_features)
    assert jnp.allclose(y32, y_ref, atol=5e-3, rtol=5e-3), "f32 mismatch"

    # ---- default bf16 compute path (f32 accumulate + epilogue) ----
    p_bf = prepare_params(weight, bias)          # bf16 by default
    y_bf = linear_block_apply(x, p_bf, out_dtype=jnp.float32)
    jax.block_until_ready(y_bf)
    assert jnp.allclose(y_bf, y_ref, atol=2e-2, rtol=2e-2), "bf16 mismatch"

    # ---- 3-D input (leading dims flattened like nn.Linear) ----
    x3 = x.reshape(2, 4, in_features)
    y3 = linear_block_apply(x3, p_bf, out_dtype=jnp.float32)
    jax.block_until_ready(y3)
    assert y3.shape == (2, 4, out_features)
    assert jnp.allclose(y3, y_ref.reshape(2, 4, out_features),
                        atol=2e-2, rtol=2e-2), "3D mismatch"

    # ---- non-aligned shapes: partial M/N blocks + K zero-pad, full-K ----
    M2, K2, N2 = 300, 200, 192
    x2 = jax.random.normal(kx, (M2, K2), dtype=jnp.float32)
    w2 = jax.random.normal(kw, (N2, K2), dtype=jnp.float32) * 0.05
    b2v = jax.random.normal(kb, (N2,), dtype=jnp.float32) * 0.05
    y2_ref = reference(x2, w2, b2v)

    p2_f32 = prepare_params(w2, b2v, jnp.float32)
    y2 = linear_block_apply(x2, p2_f32, tile_m=128, tile_n=128)
    jax.block_until_ready(y2)
    assert y2.shape == (M2, N2)
    assert jnp.allclose(y2, y2_ref, atol=5e-3, rtol=5e-3), "padded mismatch"

    # ---- K-loop accumulator fallback path (3-D grid, f32 acc scratch) ----
    y2k = linear_block_apply(x2, p2_f32, tile_m=128, tile_n=128, tile_k=128,
                             fold_k=False)
    jax.block_until_ready(y2k)
    assert jnp.allclose(y2k, y2_ref, atol=5e-3, rtol=5e-3), "k-loop mismatch"

    # ---- bf16 default on the odd shapes ----
    p2_bf = prepare_params(w2, b2v)
    y2b = linear_block_apply(x2, p2_bf, out_dtype=jnp.float32)
    jax.block_until_ready(y2b)
    assert jnp.allclose(y2b, y2_ref, atol=2e-2, rtol=2e-2), "bf16 odd mismatch"

    print("KERNEL_OK")
</pallas_src>

<mosaic_0001>
module attributes {stable_mosaic.version = 11 : i64} {
  func.func @_linear_block_fullk_kernel(%arg0: i32, %arg1: i32, %arg2: memref<8x128xf32, #tpu.memory_space<vmem>>, %arg3: memref<128x128xf32, #tpu.memory_space<vmem>>, %arg4: memref<1x128xf32, #tpu.memory_space<vmem>>, %arg5: memref<8x128xf32, #tpu.memory_space<vmem>>) attributes {dimension_semantics = [#tpu.dimension_semantics<parallel>, #tpu.dimension_semantics<parallel>], iteration_bounds = array<i64: 1, 1>, scalar_prefetch = 0 : i64, scratch_operands = 0 : i64, tpu.core_type = #tpu.core_type<tc>, window_params = [{transform_indices = @transform_0, window_bounds = array<i64: 8, 128>}, {transform_indices = @transform_1, window_bounds = array<i64: 128, 128>}, {transform_indices = @transform_2, window_bounds = array<i64: 1, 128>}, {transform_indices = @transform_3, window_bounds = array<i64: 8, 128>}]} {
    %c0 = arith.constant 0 : index
    %c0_0 = arith.constant 0 : index
    %0 = vector.load %arg2[%c0, %c0_0] : memref<8x128xf32, #tpu.memory_space<vmem>>, vector<8x128xf32>
    %c0_1 = arith.constant 0 : index
    %c0_2 = arith.constant 0 : index
    %1 = vector.load %arg3[%c0_1, %c0_2] : memref<128x128xf32, #tpu.memory_space<vmem>>, vector<128x128xf32>
    %cst = arith.constant dense<0.000000e+00> : vector<8x128xf32>
    %2 = tpu.matmul %0, %1, %cst {dimension_numbers = #tpu.dot_dimension_numbers<[1], [0], [0], [1], [0, 0, 1, 1], [], []>} : vector<8x128xf32>, vector<128x128xf32>, vector<8x128xf32> -> vector<8x128xf32>
    %c0_3 = arith.constant 0 : index
    %c0_4 = arith.constant 0 : index
    %3 = vector.load %arg4[%c0_3, %c0_4] : memref<1x128xf32, #tpu.memory_space<vmem>>, vector<1x128xf32>
    %4 = vector.broadcast %3 : vector<1x128xf32> to vector<8x128xf32>
    %5 = arith.addf %2, %4 : vector<8x128xf32>
    %cst_5 = arith.constant 0.000000e+00 : f32
    %6 = vector.broadcast %cst_5 : f32 to vector<8x128xf32>
    %7 = arith.maximumf %5, %6 : vector<8x128xf32>
    %c0_6 = arith.constant 0 : index
    %c0_7 = arith.constant 0 : index
    %8 = vector.load %arg5[%c0_6, %c0_7] : memref<8x128xf32, #tpu.memory_space<vmem>>, vector<8x128xf32>
    tpu.vector_store %arg5[%c0_6, %c0_7], %7 {strides = array<i32>} : memref<8x128xf32, #tpu.memory_space<vmem>>, vector<8x128xf32>,
    return
  }
  func.func @transform_0(%arg0: i32, %arg1: i32) -> (i32, i32) {
    %c0_i32 = arith.constant 0 : i32
    %c0_i32_0 = arith.constant 0 : i32
    return %arg0, %c0_i32 : i32, i32
  }
  func.func @transform_1(%arg0: i32, %arg1: i32) -> (i32, i32) {
    %c0_i32 = arith.constant 0 : i32
    %c0_i32_0 = arith.constant 0 : i32
    return %c0_i32, %arg1 : i32, i32
  }
  func.func @transform_2(%arg0: i32, %arg1: i32) -> (i32, i32) {
    %c0_i32 = arith.constant 0 : i32
    %c0_i32_0 = arith.constant 0 : i32
    return %c0_i32, %arg1 : i32, i32
  }
  func.func @transform_3(%arg0: i32, %arg1: i32) -> (i32, i32) {
    %c0_i32 = arith.constant 0 : i32
    return %arg0, %arg1 : i32, i32
  }
}

</mosaic_0001>

<llo_original>
// kernel: tpu_custom_call.1
$region0: #{tpu_custom_call.1}
  #allocation0 [shape = 'u32[]', space=smem, size = 0x4, offset = 0x4, fixed_abs, tag = 'smem constant byte address 0x4 - core index']
  #allocation1 [shape = 'u32[144,128]{1,0:T(1,128)}', space=vmem, size = 0x12000, scoped, tag = 'internal scratch']
  %s0 = inlined_call_operand.hbm [shape: f32[8,128], index: 0, kind: input, shape index: {}]
  %s1 = inlined_call_operand.hbm [shape: f32[128,128], index: 1, kind: input, shape index: {}]
  %s2 = inlined_call_operand.vmem [shape: f32[1,128], index: 2, kind: input, shape index: {}]
  %s3 = inlined_call_operand.hbm [shape: f32[8,128], index: 3, kind: output, shape index: {}]
  %s4 = sld [smem:[#allocation0]]
  $region30: #{tpu_custom_call.1} parent=0
    _
  %s6 = ssub.s32 1, %s4
  %s7 = scalar_select 0, %s6, %s4
  $region1: #{tpu_custom_call.1} parent=0
    #allocation2 [shape = 'u8[4096]{0}', space=vmem, size = 0x1000, scoped, tag = 'input window, operand 0, single buffered']
    #allocation3 [shape = 's32[1]{0}', space=sflag, size = 0x4, scoped, tag = 'scoped memory for tpu_custom_call.1']
    #allocation4 [shape = 's32[1]{0}', space=sflag, size = 0x4, scoped, tag = 'scoped memory for tpu_custom_call.1']
    #allocation5 [shape = 'u8[65536]{0}', space=vmem, size = 0x10000, scoped, tag = 'input window, operand 1, single buffered']
    #allocation6 [shape = 's32[1]{0}', space=sflag, size = 0x4, scoped, tag = 'scoped memory for tpu_custom_call.1']
    #allocation7 [shape = 'u8[4096]{0}', space=vmem, size = 0x1000, scoped, tag = 'output window, operand 0, single buffered']
    %8 = vsyncpa [#allocation3], 0
    %9 = vsyncpa [#allocation6], 0
    %10 = vsyncpa [#allocation4], 0
    // Predicated region
    $region2: #{tpu_custom_call.1} parent=1 // pred_check
      _
    $region3: #{tpu_custom_call.1} parent=1 // pred_check_branch
      %12 = sbr.rel (0) target = $region5
    $region4: #{tpu_custom_call.1} parent=1 // pred_region
      %s14 = ssub.s32 128, 128
      %15 = vsyncadd [#allocation3], %s14
      %s17 = sshll.u32 [#allocation2], 4
      %s18 = int_to_ptr.vmem [resolvable:$true] %s17
      %20 = dma.hbm_to_vmem [thread:$0]  %s0, 128, %s18, [#allocation3]
    $region5: #{tpu_custom_call.1} parent=1 // pred_fallthru
      _
    // Predicated region
    $region6: #{tpu_custom_call.1} parent=1 // pred_check
      _
    $region7: #{tpu_custom_call.1} parent=1 // pred_check_branch
      %22 = sbr.rel (0) target = $region9
    $region8: #{tpu_custom_call.1} parent=1 // pred_region
      %s24 = ssub.s32 2048, 2048
      %25 = vsyncadd [#allocation6], %s24
      %s26 = sshll.u32 [#allocation5], 4
      %s27 = int_to_ptr.vmem [resolvable:$true] %s26
      %32 = dma.hbm_to_vmem [thread:$0]  %s1, 2048, %s27, [#allocation6], 128, 128, 8
    $region9: #{tpu_custom_call.1} parent=1 // pred_fallthru
      _
    // Predicated region
    $region10: #{tpu_custom_call.1} parent=1 // pred_check
      _
    $region11: #{tpu_custom_call.1} parent=1 // pred_check_branch
      %34 = sbr.rel (0) target = $region13
    $region12: #{tpu_custom_call.1} parent=1 // pred_region
      _
    $region13: #{tpu_custom_call.1} parent=1 // pred_fallthru
      _
    // Predicated region
    $region14: #{tpu_custom_call.1} parent=1 // pred_check
      _
    $region15: #{tpu_custom_call.1} parent=1 // pred_check_branch
      %36 = sbr.rel (0) target = $region17
    $region16: #{tpu_custom_call.1} parent=1 // pred_region
      %37 = dma.done [#allocation3], 128
    $region17: #{tpu_custom_call.1} parent=1 // pred_fallthru
      _
    // Predicated region
    $region18: #{tpu_custom_call.1} parent=1 // pred_check
      _
    $region19: #{tpu_custom_call.1} parent=1 // pred_check_branch
      %39 = sbr.rel (0) target = $region21
    $region20: #{tpu_custom_call.1} parent=1 // pred_region
      %40 = dma.done [#allocation6], 2048
    $region21: #{tpu_custom_call.1} parent=1 // pred_fallthru
      _
    %v41 = vld [vmem:[#allocation2] sm:$0xff]
    %v42 = vld [vmem:[#allocation5] sm:$0xff]
    %v43 = vld [vmem:[#allocation5 + $0x8] sm:$0xff]
    %v44 = vld [vmem:[#allocation5 + $0x10] sm:$0xff]
    %v45 = vld [vmem:[#allocation5 + $0x18] sm:$0xff]
    %v46 = vld [vmem:[#allocation5 + $0x20] sm:$0xff]
    %v47 = vld [vmem:[#allocation5 + $0x28] sm:$0xff]
    %v48 = vld [vmem:[#allocation5 + $0x30] sm:$0xff]
    %v49 = vld [vmem:[#allocation5 + $0x38] sm:$0xff]
    %v50 = vld [vmem:[#allocation5 + $0x40] sm:$0xff]
    %v51 = vld [vmem:[#allocation5 + $0x48] sm:$0xff]
    %v52 = vld [vmem:[#allocation5 + $0x50] sm:$0xff]
    %v53 = vld [vmem:[#allocation5 + $0x58] sm:$0xff]
    %v54 = vld [vmem:[#allocation5 + $0x60] sm:$0xff]
    %v55 = vld [vmem:[#allocation5 + $0x68] sm:$0xff]
    %v56 = vld [vmem:[#allocation5 + $0x70] sm:$0xff]
    %v57 = vld [vmem:[#allocation5 + $0x78] sm:$0xff]
    %v58 = vld [vmem:[%s2] sm:$0x1]
    %v60 = vlaneseq
    %v61 = vshrl.u32 %v60, 7
    %v62 = vsub.s32 0, %v61
    %v63 = vrot.slane %v58, %v62
    %65 = vmatprep.subr.mxu0 0.0
    %66 = vmatpush1.msra.mxu0 %v42
    %67 = vmatprep.subr.mxu0 0.0
    %68 = vmatpush1.msra.mxu0 %v43
    %69 = vmatprep.subr.mxu0 0.0
    %70 = vmatpush1.msra.mxu0 %v44
    %71 = vmatprep.subr.mxu0 0.0
    %72 = vmatpush1.msra.mxu0 %v45
    %73 = vmatprep.subr.mxu0 0.0
    %74 = vmatpush1.msra.mxu0 %v46
    %75 = vmatprep.subr.mxu0 0.0
    %76 = vmatpush1.msra.mxu0 %v47
    %77 = vmatprep.subr.mxu0 0.0
    %78 = vmatpush1.msra.mxu0 %v48
    %79 = vmatprep.subr.mxu0 0.0
    %80 = vmatpush1.msra.mxu0 %v49
    %81 = vmatprep.subr.mxu0 0.0
    %82 = vmatpush1.msra.mxu0 %v50
    %83 = vmatprep.subr.mxu0 0.0
    %84 = vmatpush1.msra.mxu0 %v51
    %85 = vmatprep.subr.mxu0 0.0
    %86 = vmatpush1.msra.mxu0 %v52
    %87 = vmatprep.subr.mxu0 0.0
    %88 = vmatpush1.msra.mxu0 %v53
    %89 = vmatprep.subr.mxu0 0.0
    %90 = vmatpush1.msra.mxu0 %v54
    %91 = vmatprep.subr.mxu0 0.0
    %92 = vmatpush1.msra.mxu0 %v55
    %93 = vmatprep.subr.mxu0 0.0
    %94 = vmatpush1.msra.mxu0 %v56
    %95 = vmatprep.subr.mxu0 0.0
    %96 = vmatpush1.msra.mxu0 %v57
    %97 = vmatprep.subr.mxu0 0.0
    %98 = vmatpush1.msra.mxu0 0.0
    %99 = vmatprep.subr.mxu0 0.0
    %100 = vmatpush1.msra.mxu0 0.0
    %101 = vmatprep.subr.mxu0 0.0
    %102 = vmatpush1.msra.mxu0 0.0
    %103 = vmatprep.subr.mxu0 0.0
    %104 = vmatpush1.msra.mxu0 0.0
    %105 = vmatprep.subr.mxu0 0.0
    %106 = vmatpush1.msra.mxu0 0.0
    %107 = vmatprep.subr.mxu0 0.0
    %108 = vmatpush1.msra.mxu0 0.0
    %109 = vmatprep.subr.mxu0 0.0
    %110 = vmatpush1.msra.mxu0 0.0
    %111 = vmatprep.subr.mxu0 0.0
    %112 = vmatpush1.msra.mxu0 0.0
    %113 = vmatprep.subr.mxu0 0.0
    %114 = vmatpush1.msra.mxu0 0.0
    %115 = vmatprep.subr.mxu0 0.0
    %116 = vmatpush1.msra.mxu0 0.0
    %117 = vmatprep.subr.mxu0 0.0
    %118 = vmatpush1.msra.mxu0 0.0
    %119 = vmatprep.subr.mxu0 0.0
    %120 = vmatpush1.msra.mxu0 0.0
    %121 = vmatprep.subr.mxu0 0.0
    %122 = vmatpush1.msra.mxu0 0.0
    %123 = vmatprep.subr.mxu0 0.0
    %124 = vmatpush1.msra.mxu0 0.0
    %125 = vmatprep.subr.mxu0 0.0
    %126 = vmatpush1.msra.mxu0 0.0
    %127 = vmatprep.subr.mxu0 0.0
    %128 = vmatpush1.msra.mxu0 0.0
    %129 = vmatprep.mubr.f32.mxu0 0.0
    %130 = vmatmul.mubr.f32.gmra.mrb[0].mxu0 %v41
    %v131 = vpop.f32.mrb[0].mxu0
    %v132 = vadd.f32 %v63, %v131
    %v133 = vpop.f32.mrb[0].mxu0
    %134 = vdwg.mxu0
    %v135 = vmax.f32 %v132, 0.0
    %136 = vst [vmem:[#allocation7] sm:$0xff] %v135
    // Predicated region
    $region22: #{tpu_custom_call.1} parent=1 // pred_check
      _
    $region23: #{tpu_custom_call.1} parent=1 // pred_check_branch
      %138 = sbr.rel (0) target = $region25
    $region24: #{tpu_custom_call.1} parent=1 // pred_region
      %s140 = ssub.s32 128, 128
      %141 = vsyncadd [#allocation4], %s140
      %s143 = sshll.u32 [#allocation7], 4
      %s144 = int_to_ptr.vmem [resolvable:$true] %s143
      %146 = dma.vmem_to_hbm [thread:$0]  %s144, 128, %s3, [#allocation4]
    $region25: #{tpu_custom_call.1} parent=1 // pred_fallthru
      _
    // Predicated region
    $region26: #{tpu_custom_call.1} parent=1 // pred_check
      _
    $region27: #{tpu_custom_call.1} parent=1 // pred_check_branch
      %148 = sbr.rel (0) target = $region29
    $region28: #{tpu_custom_call.1} parent=1 // pred_region
      %149 = dma.done [#allocation4], 128
    $region29: #{tpu_custom_call.1} parent=1 // pred_fallthru
      _
    %150 = vsyncpa [#allocation3], 1
    %151 = vsyncpa [#allocation6], 1
    %152 = vsyncpa [#allocation4], 1

</llo_original>
